<compile_context>
chip_gen: v7x
topology: tpu7x:2x2x1
jax: 0.10.0
libtpu: 0.0.40
codegen_flags: <defaults>
</compile_context>

<pallas_src>
import jax
import jax.numpy as jnp
from jax.experimental import pallas as pl
from jax.experimental.pallas import tpu as pltpu


def _mlp_kernel(x_ref, w1_ref, b1_ref, w2_ref, b2_ref, o_ref):
    # First linear + bias + ReLU (MXU matmul, f32 accumulation).
    h = jnp.dot(x_ref[...], w1_ref[...], preferred_element_type=jnp.float32)
    h = jnp.maximum(h + b1_ref[...], 0.0)
    # Dropout(0.3): identity in eval mode.
    # Second linear + bias.
    y = jnp.dot(h.astype(w2_ref.dtype), w2_ref[...],
                preferred_element_type=jnp.float32)
    o_ref[...] = (y + b2_ref[...]).astype(o_ref.dtype)


def _round_up(n, m):
    return ((n + m - 1) // m) * m


def avg2rw_forward(x, w1, b1, w2, b2, *, batch_tile=None):
    """x: (B, in_dim); w1: (in_dim, H); b1: (1, H); w2: (H, out); b2: (1, out)."""
    B, in_dim = x.shape
    hidden = w1.shape[1]
    out_dim = w2.shape[1]
    out_dtype = x.dtype

    # --- Lane-dense output: pad out_dim (and w2/b2 columns) up to 128 lanes. ---
    out_pad = _round_up(out_dim, 128)
    if out_pad != out_dim:
        w2 = jnp.pad(w2, ((0, 0), (0, out_pad - out_dim)))   # zero columns
        b2 = jnp.pad(b2, ((0, 0), (0, out_pad - out_dim)))   # zero bias cols

    # --- Batch tiling: prefer >= 2 grid steps so x/out DMAs pipeline and the
    #     grid can shard across v7x's two TensorCores. Tiles are multiples of 8
    #     (sublane granularity), capped at 256 rows (fills a 256-wide MXU).  ---
    if batch_tile is None:
        batch_tile = min(B, 256)
        if batch_tile == B and B >= 16:           # force a multi-step grid
            batch_tile = max(8, (B // 2) // 8 * 8)
    B_pad = _round_up(B, batch_tile)
    if B_pad != B:
        x = jnp.pad(x, ((0, B_pad - B), (0, 0)))  # zero rows, sliced off below
    grid = (B_pad // batch_tile,)

    # --- Explicit VMEM budget: double-buffered x/out tiles + resident weights
    #     + f32 hidden activations, with 2x headroom (capped at 32 MiB so the
    #     same plan fits v7x's smaller VMEM). -------------------------------
    isz = jnp.dtype(x.dtype).itemsize
    wsz = jnp.dtype(w1.dtype).itemsize
    need = (2 * batch_tile * in_dim * isz
            + 2 * batch_tile * out_pad * isz
            + 2 * (in_dim * hidden + hidden * out_pad + hidden + out_pad) * wsz
            + batch_tile * hidden * 4)
    vmem_limit = int(min(max(2 * need, 4 << 20), 32 << 20))

    out = pl.pallas_call(
        _mlp_kernel,
        out_shape=jax.ShapeDtypeStruct((B_pad, out_pad), out_dtype),
        grid_spec=pl.GridSpec(
            grid=grid,
            in_specs=[
                pl.BlockSpec((batch_tile, in_dim), lambda i: (i, 0)),  # x tile
                pl.BlockSpec((in_dim, hidden), lambda i: (0, 0)),      # w1 (resident)
                pl.BlockSpec((1, hidden), lambda i: (0, 0)),           # b1 (resident)
                pl.BlockSpec((hidden, out_pad), lambda i: (0, 0)),     # w2 (resident, padded)
                pl.BlockSpec((1, out_pad), lambda i: (0, 0)),          # b2 (resident, padded)
            ],
            out_specs=pl.BlockSpec((batch_tile, out_pad), lambda i: (i, 0)),
        ),
        compiler_params=pltpu.CompilerParams(
            dimension_semantics=("parallel",),
            vmem_limit_bytes=vmem_limit),
    )(x, w1, b1, w2, b2)

    # Slice off batch padding and the zero-padded output columns.
    return out[:B, :out_dim]


def init_params(key, in_dim, out_dim, hidden_dim, dtype=jnp.float32):
    """Deterministic init mimicking nn.Linear: U(-1/sqrt(fan_in), 1/sqrt(fan_in))."""
    k1, k2, k3, k4 = jax.random.split(key, 4)
    bound1 = 1.0 / (in_dim ** 0.5)
    bound2 = 1.0 / (hidden_dim ** 0.5)
    w1 = jax.random.uniform(k1, (in_dim, hidden_dim), dtype, -bound1, bound1)
    b1 = jax.random.uniform(k2, (1, hidden_dim), dtype, -bound1, bound1)
    w2 = jax.random.uniform(k3, (hidden_dim, out_dim), dtype, -bound2, bound2)
    b2 = jax.random.uniform(k4, (1, out_dim), dtype, -bound2, bound2)
    return w1, b1, w2, b2


if __name__ == "__main__":
    # Shapes implied by the forward: x is (batch, in_dim). Batch is kept at 256
    # so the default tiling yields a 2-step pipelined grid (tile = 128 rows).
    batch, in_dim, hidden_dim, out_dim = 256, 32, 512, 8

    key = jax.random.PRNGKey(0)
    kx, kp = jax.random.split(key)
    x = jax.random.normal(kx, (batch, in_dim), dtype=jnp.float32)
    w1, b1, w2, b2 = init_params(kp, in_dim, out_dim, hidden_dim)

    out = avg2rw_forward(x, w1, b1, w2, b2)
    out = jax.block_until_ready(out)

    # Pure-JAX reference check (eval-mode dropout == identity).
    ref = jnp.maximum(x @ w1 + b1, 0.0) @ w2 + b2
    assert out.shape == (batch, out_dim)
    assert jnp.allclose(out, ref, atol=1e-4, rtol=1e-4), float(
        jnp.max(jnp.abs(out - ref)))

    print("KERNEL_OK")
</pallas_src>

<mosaic_0001>
module attributes {stable_mosaic.version = 11 : i64} {
  func.func @_mlp_kernel(%arg0: i32, %arg1: memref<128x32xf32, #tpu.memory_space<vmem>>, %arg2: memref<32x512xf32, #tpu.memory_space<vmem>>, %arg3: memref<1x512xf32, #tpu.memory_space<vmem>>, %arg4: memref<512x128xf32, #tpu.memory_space<vmem>>, %arg5: memref<1x128xf32, #tpu.memory_space<vmem>>, %arg6: memref<128x128xf32, #tpu.memory_space<vmem>>) attributes {dimension_semantics = [#tpu.dimension_semantics<parallel>], iteration_bounds = array<i64: 2>, scalar_prefetch = 0 : i64, scratch_operands = 0 : i64, tpu.core_type = #tpu.core_type<tc>, window_params = [{transform_indices = @transform_0, window_bounds = array<i64: 128, 32>}, {pipeline_mode = #tpu.pipeline_mode<synchronous>, transform_indices = @transform_1, window_bounds = array<i64: 32, 512>}, {pipeline_mode = #tpu.pipeline_mode<synchronous>, transform_indices = @transform_2, window_bounds = array<i64: 1, 512>}, {pipeline_mode = #tpu.pipeline_mode<synchronous>, transform_indices = @transform_3, window_bounds = array<i64: 512, 128>}, {pipeline_mode = #tpu.pipeline_mode<synchronous>, transform_indices = @transform_4, window_bounds = array<i64: 1, 128>}, {transform_indices = @transform_5, window_bounds = array<i64: 128, 128>}]} {
    %c0 = arith.constant 0 : index
    %c0_0 = arith.constant 0 : index
    %0 = vector.load %arg1[%c0, %c0_0] : memref<128x32xf32, #tpu.memory_space<vmem>>, vector<128x32xf32>
    %c0_1 = arith.constant 0 : index
    %c0_2 = arith.constant 0 : index
    %1 = vector.load %arg2[%c0_1, %c0_2] : memref<32x512xf32, #tpu.memory_space<vmem>>, vector<32x512xf32>
    %cst = arith.constant dense<0.000000e+00> : vector<128x512xf32>
    %2 = tpu.matmul %0, %1, %cst {dimension_numbers = #tpu.dot_dimension_numbers<[1], [0], [0], [1], [0, 0, 1, 1], [], []>} : vector<128x32xf32>, vector<32x512xf32>, vector<128x512xf32> -> vector<128x512xf32>
    %c0_3 = arith.constant 0 : index
    %c0_4 = arith.constant 0 : index
    %3 = vector.load %arg3[%c0_3, %c0_4] : memref<1x512xf32, #tpu.memory_space<vmem>>, vector<1x512xf32>
    %4 = vector.broadcast %3 : vector<1x512xf32> to vector<128x512xf32>
    %5 = arith.addf %2, %4 : vector<128x512xf32>
    %cst_5 = arith.constant 0.000000e+00 : f32
    %6 = vector.broadcast %cst_5 : f32 to vector<128x512xf32>
    %7 = arith.maximumf %5, %6 : vector<128x512xf32>
    %c0_6 = arith.constant 0 : index
    %c0_7 = arith.constant 0 : index
    %8 = vector.load %arg4[%c0_6, %c0_7] : memref<512x128xf32, #tpu.memory_space<vmem>>, vector<512x128xf32>
    %cst_8 = arith.constant dense<0.000000e+00> : vector<128x128xf32>
    %9 = tpu.matmul %7, %8, %cst_8 {dimension_numbers = #tpu.dot_dimension_numbers<[1], [0], [0], [1], [0, 0, 1, 1], [], []>} : vector<128x512xf32>, vector<512x128xf32>, vector<128x128xf32> -> vector<128x128xf32>
    %c0_9 = arith.constant 0 : index
    %c0_10 = arith.constant 0 : index
    %10 = vector.load %arg5[%c0_9, %c0_10] : memref<1x128xf32, #tpu.memory_space<vmem>>, vector<1x128xf32>
    %11 = vector.broadcast %10 : vector<1x128xf32> to vector<128x128xf32>
    %12 = arith.addf %9, %11 : vector<128x128xf32>
    %c0_11 = arith.constant 0 : index
    %c0_12 = arith.constant 0 : index
    %13 = vector.load %arg6[%c0_11, %c0_12] : memref<128x128xf32, #tpu.memory_space<vmem>>, vector<128x128xf32>
    tpu.vector_store %arg6[%c0_11, %c0_12], %12 {strides = array<i32>} : memref<128x128xf32, #tpu.memory_space<vmem>>, vector<128x128xf32>,
    return
  }
  func.func @transform_0(%arg0: i32) -> (i32, i32) {
    %c0_i32 = arith.constant 0 : i32
    %c0_i32_0 = arith.constant 0 : i32
    return %arg0, %c0_i32 : i32, i32
  }
  func.func @transform_1(%arg0: i32) -> (i32, i32) {
    %c0_i32 = arith.constant 0 : i32
    %c0_i32_0 = arith.constant 0 : i32
    %c0_i32_1 = arith.constant 0 : i32
    return %c0_i32, %c0_i32_0 : i32, i32
  }
  func.func @transform_2(%arg0: i32) -> (i32, i32) {
    %c0_i32 = arith.constant 0 : i32
    %c0_i32_0 = arith.constant 0 : i32
    %c0_i32_1 = arith.constant 0 : i32
    return %c0_i32, %c0_i32_0 : i32, i32
  }
  func.func @transform_3(%arg0: i32) -> (i32, i32) {
    %c0_i32 = arith.constant 0 : i32
    %c0_i32_0 = arith.constant 0 : i32
    %c0_i32_1 = arith.constant 0 : i32
    return %c0_i32, %c0_i32_0 : i32, i32
  }
  func.func @transform_4(%arg0: i32) -> (i32, i32) {
    %c0_i32 = arith.constant 0 : i32
    %c0_i32_0 = arith.constant 0 : i32
    %c0_i32_1 = arith.constant 0 : i32
    return %c0_i32, %c0_i32_0 : i32, i32
  }
  func.func @transform_5(%arg0: i32) -> (i32, i32) {
    %c0_i32 = arith.constant 0 : i32
    %c0_i32_0 = arith.constant 0 : i32
    return %arg0, %c0_i32 : i32, i32
  }
}

</mosaic_0001>

<llo_original>
// kernel: tpu_custom_call.1
$region0: #{tpu_custom_call.1}
  #allocation0 [shape = 'u32[]', space=smem, size = 0x4, offset = 0x4, fixed_abs, tag = 'smem constant byte address 0x4 - core index']
  #allocation1 [shape = 'u32[144,128]{1,0:T(1,128)}', space=vmem, size = 0x12000, scoped, tag = 'internal scratch']
  %s0 = inlined_call_operand.vmem [shape: f32[256,32], index: 0, kind: input, shape index: {}]
  %s1 = inlined_call_operand.vmem [shape: f32[32,512], index: 1, kind: input, shape index: {}]
  %s2 = inlined_call_operand.vmem [shape: f32[1,512], index: 2, kind: input, shape index: {}]
  %s3 = inlined_call_operand.hbm [shape: f32[512,128], index: 3, kind: input, shape index: {}]
  %s4 = inlined_call_operand.vmem [shape: f32[1,128], index: 4, kind: input, shape index: {}]
  %s5 = inlined_call_operand.hbm [shape: f32[256,128], index: 5, kind: output, shape index: {}]
  %s6 = sld [smem:[#allocation0]]
  $region57: #{tpu_custom_call.1} parent=0
    _
  %s8 = ssub.s32 1, %s6
  %s9 = scalar_select 0, %s8, %s6
  $region1: #{tpu_custom_call.1} parent=0
    #allocation2 [shape = 'u8[262144]{0}', space=vmem, size = 0x40000, scoped, tag = 'input window, operand 3, single buffered']
    #allocation3 [shape = 's32[2]{0}', space=sflag, size = 0x8, scoped, tag = 'scoped memory for tpu_custom_call.1']
    #allocation4 [shape = 's32[2]{0}', space=sflag, size = 0x8, scoped, tag = 'scoped memory for tpu_custom_call.1']
    #allocation5 [shape = 'u8[131072]{0}', space=vmem, size = 0x20000, scoped, tag = 'output window, operand 0']
    %10 = vsyncpa [#allocation3], 0
    %11 = vsyncpa [#allocation4], 0
    %s12 = scalar_lea.sflag [#allocation4], 1
    %13 = vsyncpa %s12, 0
    loop: start=0, step=1, limit=4
    $region2: #{tpu_custom_call.1} parent=1 // loop_pre_header
      _
    $region3: #{tpu_custom_call.1} parent=1 // loop_header
      %s15 = sphi 0, %s19
      %p16 = scmp.ge.s32.totalorder %s15, 4
      %s25 = sphi 0, %s27
      %s28 = sphi 0, %s25
      %s29 = sphi 0, %s28
      %s45 = sphi 0, %s29
      %s49 = sphi 0, %s49
      %s51 = sphi 0, %s49
      %s52 = sphi 0, %s51
      %s66 = sphi 0, %s52
      %s70 = sphi 0, %s70
      %s72 = sphi 0, %s70
      %s73 = sphi 0, %s72
      %s87 = sphi 0, %s73
      %s91 = sphi 0, %s91
      %s93 = sphi 0, %s91
      %s94 = sphi 0, %s93
      %s108 = sphi 0, %s94
      %s112 = sphi 0, %s112
      %s114 = sphi 0, %s112
      %s115 = sphi 0, %s114
      %s129 = sphi 0, %s115
      %s135 = sphi 0, %s137
      %s138 = sphi 0, %s135
      %s139 = sphi 0, %s138
      %s155 = sphi 0, %s139
    $region4: #{tpu_custom_call.1} parent=1 // loop_header_branch
      %18 = sbr.rel (%p16) target = $region8
    $region5: #{tpu_custom_call.1} parent=1 // loop_body
      %s20 = ssub.s32 %s15, 1
      %s21 = ssub.s32 %s15, 2
      %s22 = sadd.s32 %s15, 1
      %s23 = ssub.s32 %s15, %s22
      %p24 = scmp.eq.s32.totalorder %s23, 0
      %s26 = sadd.s32 %s25, 1
      %s27 = scalar_select %p24, %s25, %s26
      %p30 = pneg %p24
      %p31 = scmp.eq.s32.totalorder %s15, 1
      %p32 = por %p30, %p31
      %p33 = scmp.ne.s32.totalorder %s25, %s28
      %p34 = scmp.eq.s32.totalorder %s15, 0
      %p35 = por %p33, %p34
      %p36 = scmp.ne.s32.totalorder %s25, %s28
      %p37 = scmp.eq.s32.totalorder %s20, 1
      %p38 = por %p36, %p37
      %p39 = scmp.ne.s32.totalorder %s28, %s29
      %p40 = scmp.eq.s32.totalorder %s20, 0
      %p41 = por %p39, %p40
      %p42 = scmp.ne.s32.totalorder %s28, %s29
      %p43 = scmp.eq.s32.totalorder %s21, 1
      %p44 = por %p42, %p43
      %p46 = scmp.ne.s32.totalorder %s29, %s45
      %p47 = scmp.eq.s32.totalorder %s21, 0
      %p48 = por %p46, %p47
      %s50 = sadd.s32 %s49, 1
      %p53 = scmp.eq.s32.totalorder %s15, 1
      %p54 = scmp.ne.s32.totalorder %s49, %s51
      %p55 = scmp.eq.s32.totalorder %s15, 0
      %p56 = por %p54, %p55
      %p57 = scmp.ne.s32.totalorder %s49, %s51
      %p58 = scmp.eq.s32.totalorder %s20, 1
      %p59 = por %p57, %p58
      %p60 = scmp.ne.s32.totalorder %s51, %s52
      %p61 = scmp.eq.s32.totalorder %s20, 0
      %p62 = por %p60, %p61
      %p63 = scmp.ne.s32.totalorder %s51, %s52
      %p64 = scmp.eq.s32.totalorder %s21, 1
      %p65 = por %p63, %p64
      %p67 = scmp.ne.s32.totalorder %s52, %s66
      %p68 = scmp.eq.s32.totalorder %s21, 0
      %p69 = por %p67, %p68
      %s71 = sadd.s32 %s70, 1
      %p74 = scmp.eq.s32.totalorder %s15, 1
      %p75 = scmp.ne.s32.totalorder %s70, %s72
      %p76 = scmp.eq.s32.totalorder %s15, 0
      %p77 = por %p75, %p76
      %p78 = scmp.ne.s32.totalorder %s70, %s72
      %p79 = scmp.eq.s32.totalorder %s20, 1
      %p80 = por %p78, %p79
      %p81 = scmp.ne.s32.totalorder %s72, %s73
      %p82 = scmp.eq.s32.totalorder %s20, 0
      %p83 = por %p81, %p82
      %p84 = scmp.ne.s32.totalorder %s72, %s73
      %p85 = scmp.eq.s32.totalorder %s21, 1
      %p86 = por %p84, %p85
      %p88 = scmp.ne.s32.totalorder %s73, %s87
      %p89 = scmp.eq.s32.totalorder %s21, 0
      %p90 = por %p88, %p89
      %s92 = sadd.s32 %s91, 1
      %p95 = scmp.eq.s32.totalorder %s15, 1
      %p96 = scmp.ne.s32.totalorder %s91, %s93
      %p97 = scmp.eq.s32.totalorder %s15, 0
      %p98 = por %p96, %p97
      %p99 = scmp.ne.s32.totalorder %s91, %s93
      %p100 = scmp.eq.s32.totalorder %s20, 1
      %p101 = por %p99, %p100
      %p102 = scmp.ne.s32.totalorder %s93, %s94
      %p103 = scmp.eq.s32.totalorder %s20, 0
      %p104 = por %p102, %p103
      %p105 = scmp.ne.s32.totalorder %s93, %s94
      %p106 = scmp.eq.s32.totalorder %s21, 1
      %p107 = por %p105, %p106
      %p109 = scmp.ne.s32.totalorder %s94, %s108
      %p110 = scmp.eq.s32.totalorder %s21, 0
      %p111 = por %p109, %p110
      %s113 = sadd.s32 %s112, 1
      %p116 = scmp.eq.s32.totalorder %s15, 1
      %p117 = scmp.ne.s32.totalorder %s112, %s114
      %p118 = scmp.eq.s32.totalorder %s15, 0
      %p119 = por %p117, %p118
      %p120 = scmp.ne.s32.totalorder %s112, %s114
      %p121 = scmp.eq.s32.totalorder %s20, 1
      %p122 = por %p120, %p121
      %p123 = scmp.ne.s32.totalorder %s114, %s115
      %p124 = scmp.eq.s32.totalorder %s20, 0
      %p125 = por %p123, %p124
      %p126 = scmp.ne.s32.totalorder %s114, %s115
      %p127 = scmp.eq.s32.totalorder %s21, 1
      %p128 = por %p126, %p127
      %p130 = scmp.ne.s32.totalorder %s115, %s129
      %p131 = scmp.eq.s32.totalorder %s21, 0
      %p132 = por %p130, %p131
      %s133 = ssub.s32 %s15, %s22
      %p134 = scmp.eq.s32.totalorder %s133, 0
      %s136 = sadd.s32 %s135, 1
      %s137 = scalar_select %p134, %s135, %s136
      %p140 = pneg %p134
      %p141 = scmp.eq.s32.totalorder %s15, 1
      %p142 = por %p140, %p141
      %p143 = scmp.ne.s32.totalorder %s135, %s138
      %p144 = scmp.eq.s32.totalorder %s15, 0
      %p145 = por %p143, %p144
      %p146 = scmp.ne.s32.totalorder %s135, %s138
      %p147 = scmp.eq.s32.totalorder %s20, 1
      %p148 = por %p146, %p147
      %p149 = scmp.ne.s32.totalorder %s138, %s139
      %p150 = scmp.eq.s32.totalorder %s20, 0
      %p151 = por %p149, %p150
      %p152 = scmp.ne.s32.totalorder %s138, %s139
      %p153 = scmp.eq.s32.totalorder %s21, 1
      %p154 = por %p152, %p153
      %p156 = scmp.ne.s32.totalorder %s139, %s155
      %p157 = scmp.eq.s32.totalorder %s21, 0
      %p158 = por %p156, %p157
      %p159 = scmp.le.s32.totalorder 1, %s15
      %p160 = scmp.lt.s32.totalorder %s15, 3
      %p161 = pnand %p159, %p160
      %p162 = pneg %p161
      // Predicated region
      $region9: #{tpu_custom_call.1} parent=5 // pred_check
        _
      $region10: #{tpu_custom_call.1} parent=5 // pred_check_branch
        %164 = sbr.rel (%p161) target = $region12
      $region11: #{tpu_custom_call.1} parent=5 // pred_region
        %s165 = ssub.s32 %s15, 1
        // Predicated region
        $region13: #{tpu_custom_call.1} parent=11 // pred_check
          %p166 = pneg %p62
        $region14: #{tpu_custom_call.1} parent=11 // pred_check_branch
          %168 = sbr.rel (%p166) target = $region16
        $region15: #{tpu_custom_call.1} parent=11 // pred_region
          _
        $region16: #{tpu_custom_call.1} parent=11 // pred_fallthru
          _
        // Predicated region
        $region17: #{tpu_custom_call.1} parent=11 // pred_check
          %p169 = pneg %p83
        $region18: #{tpu_custom_call.1} parent=11 // pred_check_branch
          %171 = sbr.rel (%p169) target = $region20
        $region19: #{tpu_custom_call.1} parent=11 // pred_region
          _
        $region20: #{tpu_custom_call.1} parent=11 // pred_fallthru
          _
        // Predicated region
        $region21: #{tpu_custom_call.1} parent=11 // pred_check
          %p172 = pneg %p104
        $region22: #{tpu_custom_call.1} parent=11 // pred_check_branch
          %174 = sbr.rel (%p172) target = $region24
        $region23: #{tpu_custom_call.1} parent=11 // pred_region
          %s176 = ssub.s32 8192, 8192
          %177 = vsyncadd [#allocation3], %s176
          %s178 = sshll.u32 [#allocation2], 4
          %s179 = int_to_ptr.vmem [resolvable:$true] %s178
          %184 = dma.hbm_to_vmem [thread:$0]  %s3, 8192, %s179, [#allocation3], 128, 128, 8
        $region24: #{tpu_custom_call.1} parent=11 // pred_fallthru
          _
        // Predicated region
        $region25: #{tpu_custom_call.1} parent=11 // pred_check
          %p185 = pneg %p125
        $region26: #{tpu_custom_call.1} parent=11 // pred_check_branch
          %187 = sbr.rel (%p185) target = $region28
        $region27: #{tpu_custom_call.1} parent=11 // pred_region
          _
        $region28: #{tpu_custom_call.1} parent=11 // pred_fallthru
          _
      $region12: #{tpu_custom_call.1} parent=5 // pred_fallthru
        _
      %p188 = scmp.lt.s32.totalorder %s15, 2
      // Predicated region
      $region29: #{tpu_custom_call.1} parent=5 // pred_check
        %p189 = pneg %p188
      $region30: #{tpu_custom_call.1} parent=5 // pred_check_branch
        %191 = sbr.rel (%p189) target = $region32
      $region31: #{tpu_custom_call.1} parent=5 // pred_region
        // Predicated region
        $region33: #{tpu_custom_call.1} parent=31 // pred_check
          %p192 = pneg %p35
        $region34: #{tpu_custom_call.1} parent=31 // pred_check_branch
          %194 = sbr.rel (%p192) target = $region36
        $region35: #{tpu_custom_call.1} parent=31 // pred_region
          %s195 = smul.u32 16, %s15
          %p196 = scmp.lt.s32.totalorder %s195, 31
          %s197 = scalar_select %p196, %s195, 31
          %s198 = smul.addr %s197, 8
          %s199 = scalar_lea.vmem %s0, %s198
          %s200 = smul.u32 16, %s15
        $region36: #{tpu_custom_call.1} parent=31 // pred_fallthru
          _
      $region32: #{tpu_custom_call.1} parent=5 // pred_fallthru
        _
      %p201 = scmp.le.s32.totalorder 1, %s15
      %p202 = scmp.lt.s32.totalorder %s15, 3
      %p203 = pnand %p201, %p202
      %p204 = pneg %p203
      // Predicated region
      $region37: #{tpu_custom_call.1} parent=5 // pred_check
        _
      $region38: #{tpu_custom_call.1} parent=5 // pred_check_branch
        %206 = sbr.rel (%p203) target = $region40
      $region39: #{tpu_custom_call.1} parent=5 // pred_region
        %s207 = ssub.s32 %s15, 1
        // Predicated region
        $region41: #{tpu_custom_call.1} parent=39 // pred_check
          %p208 = pneg %p104
        $region42: #{tpu_custom_call.1} parent=39 // pred_check_branch
          %210 = sbr.rel (%p208) target = $region44
        $region43: #{tpu_custom_call.1} parent=39 // pred_region
          %211 = dma.done [#allocation3], 8192
        $region44: #{tpu_custom_call.1} parent=39 // pred_fallthru
          _
        %s212 = smul.u32 16, %s20
        %p213 = scmp.lt.s32.totalorder %s212, 31
        %s214 = scalar_select %p213, %s212, 31
        %s215 = smul.addr %s214, 8
        %s216 = scalar_lea.vmem %s0, %s215
        %p217 = pneg %p41
        %p218 = pneg %p38
        %p219 = pneg %p62
        %p220 = pneg %p59
        %p221 = pneg %p83
        %p222 = pneg %p80
        %p223 = pneg %p104
        %p224 = pneg %p101
        %p225 = pneg %p125
        %p226 = pneg %p122
        %p227 = pneg %p151
        %p228 = pneg %p148
        %s229 = sand.u32 %s138, 1
        %s230 = scalar_lea.sflag [#allocation4], %s229
        %s231 = sand.u32 %s138, 1
        %s232 = smul.addr %s231, 128
        %s233 = scalar_lea.vmem [#allocation5], %s232
        %s234 = smul.u32 16, %s20
        %p235 = scmp.lt.s32.totalorder %s234, 31
        %s236 = scalar_select %p235, %s234, 31
        %s237 = smul.addr %s236, 8
        %s238 = scalar_lea.vmem %s0, %s237
        %s239 = smul.u32 16, %s20
        %s240 = smul.u32 16, %s20
        %v241 = vld [vmem:[%s238] sm:$0xff]
        %v242 = vld [vmem:[%s238 + $0x8] sm:$0xff]
        %v243 = vld [vmem:[%s238 + $0x10] sm:$0xff]
        %v244 = vld [vmem:[%s238 + $0x18] sm:$0xff]
        %v245 = vld [vmem:[%s238 + $0x20] sm:$0xff]
        %v246 = vld [vmem:[%s238 + $0x28] sm:$0xff]
        %v247 = vld [vmem:[%s238 + $0x30] sm:$0xff]
        %v248 = vld [vmem:[%s238 + $0x38] sm:$0xff]
        %v249 = vld [vmem:[%s238 + $0x40] sm:$0xff]
        %v250 = vld [vmem:[%s238 + $0x48] sm:$0xff]
        %v251 = vld [vmem:[%s238 + $0x50] sm:$0xff]
        %v252 = vld [vmem:[%s238 + $0x58] sm:$0xff]
        %v253 = vld [vmem:[%s238 + $0x60] sm:$0xff]
        %v254 = vld [vmem:[%s238 + $0x68] sm:$0xff]
        %v255 = vld [vmem:[%s238 + $0x70] sm:$0xff]
        %v256 = vld [vmem:[%s238 + $0x78] sm:$0xff]
        %v257 = vld [vmem:[%s1] sm:$0xff]
        %v258 = vld [vmem:[%s1 + $0x8] sm:$0xff]
        %v259 = vld [vmem:[%s1 + $0x10] sm:$0xff]
        %v260 = vld [vmem:[%s1 + $0x18] sm:$0xff]
        %v261 = vld [vmem:[%s1 + $0x20] sm:$0xff]
        %v262 = vld [vmem:[%s1 + $0x28] sm:$0xff]
        %v263 = vld [vmem:[%s1 + $0x30] sm:$0xff]
        %v264 = vld [vmem:[%s1 + $0x38] sm:$0xff]
        %v265 = vld [vmem:[%s1 + $0x40] sm:$0xff]
        %v266 = vld [vmem:[%s1 + $0x48] sm:$0xff]
        %v267 = vld [vmem:[%s1 + $0x50] sm:$0xff]
        %v268 = vld [vmem:[%s1 + $0x58] sm:$0xff]
        %v269 = vld [vmem:[%s1 + $0x60] sm:$0xff]
        %v270 = vld [vmem:[%s1 + $0x68] sm:$0xff]
        %v271 = vld [vmem:[%s1 + $0x70] sm:$0xff]
        %v272 = vld [vmem:[%s1 + $0x78] sm:$0xff]
        %v273 = vld [vmem:[%s2] sm:$0xf]
        %v275 = vlaneseq
        %v276 = vshrl.u32 %v275, 7
        %v277 = vsub.s32 0, %v276
        %v278 = vrot.slane %v273, %v277
        %v279 = vlaneseq
        %v280 = vshrl.u32 %v279, 7
        %v281 = vsub.s32 1, %v280
        %v282 = vrot.slane %v273, %v281
        %v283 = vlaneseq
        %v284 = vshrl.u32 %v283, 7
        %v285 = vsub.s32 2, %v284
        %v286 = vrot.slane %v273, %v285
        %v287 = vlaneseq
        %v288 = vshrl.u32 %v287, 7
        %v289 = vsub.s32 3, %v288
        %v290 = vrot.slane %v273, %v289
        %vm295 = vcmask 261120
        %v297 = vsel %vm295, %v241, 0
        %v300 = vsel %vm295, %v242, 0
        %v303 = vsel %vm295, %v243, 0
        %v306 = vsel %vm295, %v244, 0
        %v309 = vsel %vm295, %v245, 0
        %v312 = vsel %vm295, %v246, 0
        %v315 = vsel %vm295, %v247, 0
        %v318 = vsel %vm295, %v248, 0
        %v321 = vsel %vm295, %v249, 0
        %v324 = vsel %vm295, %v250, 0
        %v327 = vsel %vm295, %v251, 0
        %v330 = vsel %vm295, %v252, 0
        %v333 = vsel %vm295, %v253, 0
        %v336 = vsel %vm295, %v254, 0
        %v339 = vsel %vm295, %v255, 0
        %v342 = vsel %vm295, %v256, 0
        %344 = vmatprep.subr.mxu0 %v258
        %345 = vmatpush1.msra.mxu0 %v257
        %346 = vmatprep.subr.mxu0 %v262
        %347 = vmatpush1.msra.mxu0 %v261
        %348 = vmatprep.subr.mxu0 %v266
        %349 = vmatpush1.msra.mxu0 %v265
        %350 = vmatprep.subr.mxu0 %v270
        %351 = vmatpush1.msra.mxu0 %v269
        %352 = vmatprep.subr.mxu0 0.0
        %353 = vmatpush1.msra.mxu0 0.0
        %354 = vmatprep.subr.mxu0 0.0
        %355 = vmatpush1.msra.mxu0 0.0
        %356 = vmatprep.subr.mxu0 0.0
        %357 = vmatpush1.msra.mxu0 0.0
        %358 = vmatprep.subr.mxu0 0.0
        %359 = vmatpush1.msra.mxu0 0.0
        %360 = vmatprep.subr.mxu0 0.0
        %361 = vmatpush1.msra.mxu0 0.0
        %362 = vmatprep.subr.mxu0 0.0
        %363 = vmatpush1.msra.mxu0 0.0
        %364 = vmatprep.subr.mxu0 0.0
        %365 = vmatpush1.msra.mxu0 0.0
        %366 = vmatprep.subr.mxu0 0.0
        %367 = vmatpush1.msra.mxu0 0.0
        %368 = vmatprep.subr.mxu0 0.0
        %369 = vmatpush1.msra.mxu0 0.0
        %370 = vmatprep.subr.mxu0 0.0
        %371 = vmatpush1.msra.mxu0 0.0
        %372 = vmatprep.subr.mxu0 0.0
        %373 = vmatpush1.msra.mxu0 0.0
        %374 = vmatprep.subr.mxu0 0.0
        %375 = vmatpush1.msra.mxu0 0.0
        %376 = vmatprep.subr.mxu0 0.0
        %377 = vmatpush1.msra.mxu0 0.0
        %378 = vmatprep.subr.mxu0 0.0
        %379 = vmatpush1.msra.mxu0 0.0
        %380 = vmatprep.subr.mxu0 0.0
        %381 = vmatpush1.msra.mxu0 0.0
        %382 = vmatprep.subr.mxu0 0.0
        %383 = vmatpush1.msra.mxu0 0.0
        %384 = vmatprep.subr.mxu0 0.0
        %385 = vmatpush1.msra.mxu0 0.0
        %386 = vmatprep.subr.mxu0 0.0
        %387 = vmatpush1.msra.mxu0 0.0
        %388 = vmatprep.subr.mxu0 0.0
        %389 = vmatpush1.msra.mxu0 0.0
        %390 = vmatprep.subr.mxu0 0.0
        %391 = vmatpush1.msra.mxu0 0.0
        %392 = vmatprep.subr.mxu0 0.0
        %393 = vmatpush1.msra.mxu0 0.0
        %394 = vmatprep.subr.mxu0 0.0
        %395 = vmatpush1.msra.mxu0 0.0
        %396 = vmatprep.subr.mxu0 0.0
        %397 = vmatpush1.msra.mxu0 0.0
        %398 = vmatprep.subr.mxu0 0.0
        %399 = vmatpush1.msra.mxu0 0.0
        %400 = vmatprep.subr.mxu0 0.0
        %401 = vmatpush1.msra.mxu0 0.0
        %402 = vmatprep.subr.mxu0 0.0
        %403 = vmatpush1.msra.mxu0 0.0
        %404 = vmatprep.subr.mxu0 0.0
        %405 = vmatpush1.msra.mxu0 0.0
        %406 = vmatprep.subr.mxu0 0.0
        %407 = vmatpush1.msra.mxu0 0.0
        %408 = vmatprep.mubr.f32.mxu0 0.0
        %409 = vmatmul.mubr.f32.gmra.mrb[0].mxu0 %v297
        %v410 = vpop.f32.mrb[0].mxu0
        %v411 = vadd.f32 %v278, %v410
        %v412 = vpop.f32.mrb[0].mxu0
        %v413 = vadd.f32 %v282, %v412
        %414 = vmatprep.mubr.f32.mxu0 0.0
        %415 = vmatmul.mubr.f32.gmra.mrb[0].mxu0 %v300
        %v416 = vpop.f32.mrb[0].mxu0
        %v417 = vadd.f32 %v278, %v416
        %v418 = vpop.f32.mrb[0].mxu0
        %v419 = vadd.f32 %v282, %v418
        %420 = vmatprep.mubr.f32.mxu0 0.0
        %421 = vmatmul.mubr.f32.gmra.mrb[0].mxu0 %v303
        %v422 = vpop.f32.mrb[0].mxu0
        %v423 = vadd.f32 %v278, %v422
        %v424 = vpop.f32.mrb[0].mxu0
        %v425 = vadd.f32 %v282, %v424
        %426 = vmatprep.mubr.f32.mxu0 0.0
        %427 = vmatmul.mubr.f32.gmra.mrb[0].mxu0 %v306
        %v428 = vpop.f32.mrb[0].mxu0
        %v429 = vadd.f32 %v278, %v428
        %v430 = vpop.f32.mrb[0].mxu0
        %v431 = vadd.f32 %v282, %v430
        %432 = vmatprep.mubr.f32.mxu0 0.0
        %433 = vmatmul.mubr.f32.gmra.mrb[0].mxu0 %v309
        %v434 = vpop.f32.mrb[0].mxu0
        %v435 = vadd.f32 %v278, %v434
        %v436 = vpop.f32.mrb[0].mxu0
        %v437 = vadd.f32 %v282, %v436
        %438 = vmatprep.mubr.f32.mxu0 0.0
        %439 = vmatmul.mubr.f32.gmra.mrb[0].mxu0 %v312
        %v440 = vpop.f32.mrb[0].mxu0
        %v441 = vadd.f32 %v278, %v440
        %v442 = vpop.f32.mrb[0].mxu0
        %v443 = vadd.f32 %v282, %v442
        %444 = vmatprep.mubr.f32.mxu0 0.0
        %445 = vmatmul.mubr.f32.gmra.mrb[0].mxu0 %v315
        %v446 = vpop.f32.mrb[0].mxu0
        %v447 = vadd.f32 %v278, %v446
        %v448 = vpop.f32.mrb[0].mxu0
        %v449 = vadd.f32 %v282, %v448
        %450 = vmatprep.mubr.f32.mxu0 0.0
        %451 = vmatmul.mubr.f32.gmra.mrb[0].mxu0 %v318
        %v452 = vpop.f32.mrb[0].mxu0
        %v453 = vadd.f32 %v278, %v452
        %v454 = vpop.f32.mrb[0].mxu0
        %v455 = vadd.f32 %v282, %v454
        %456 = vmatprep.mubr.f32.mxu0 0.0
        %457 = vmatmul.mubr.f32.gmra.mrb[0].mxu0 %v321
        %v458 = vpop.f32.mrb[0].mxu0
        %v459 = vadd.f32 %v278, %v458
        %v460 = vpop.f32.mrb[0].mxu0
        %v461 = vadd.f32 %v282, %v460
        %462 = vmatprep.mubr.f32.mxu0 0.0
        %463 = vmatmul.mubr.f32.gmra.mrb[0].mxu0 %v324
        %v464 = vpop.f32.mrb[0].mxu0
        %v465 = vadd.f32 %v278, %v464
        %v466 = vpop.f32.mrb[0].mxu0
        %v467 = vadd.f32 %v282, %v466
        %468 = vmatprep.mubr.f32.mxu0 0.0
        %469 = vmatmul.mubr.f32.gmra.mrb[0].mxu0 %v327
        %v470 = vpop.f32.mrb[0].mxu0
        %v471 = vadd.f32 %v278, %v470
        %v472 = vpop.f32.mrb[0].mxu0
        %v473 = vadd.f32 %v282, %v472
        %474 = vmatprep.mubr.f32.mxu0 0.0
        %475 = vmatmul.mubr.f32.gmra.mrb[0].mxu0 %v330
        %v476 = vpop.f32.mrb[0].mxu0
        %v477 = vadd.f32 %v278, %v476
        %v478 = vpop.f32.mrb[0].mxu0
        %v479 = vadd.f32 %v282, %v478
        %480 = vmatprep.mubr.f32.mxu0 0.0
        %481 = vmatmul.mubr.f32.gmra.mrb[0].mxu0 %v333
        %v482 = vpop.f32.mrb[0].mxu0
        %v483 = vadd.f32 %v278, %v482
        %v484 = vpop.f32.mrb[0].mxu0
        %v485 = vadd.f32 %v282, %v484
        %486 = vmatprep.mubr.f32.mxu0 0.0
        %487 = vmatmul.mubr.f32.gmra.mrb[0].mxu0 %v336
        %v488 = vpop.f32.mrb[0].mxu0
        %v489 = vadd.f32 %v278, %v488
        %v490 = vpop.f32.mrb[0].mxu0
        %v491 = vadd.f32 %v282, %v490
        %492 = vmatprep.mubr.f32.mxu0 0.0
        %493 = vmatmul.mubr.f32.gmra.mrb[0].mxu0 %v339
        %v494 = vpop.f32.mrb[0].mxu0
        %v495 = vadd.f32 %v278, %v494
        %v496 = vpop.f32.mrb[0].mxu0
        %v497 = vadd.f32 %v282, %v496
        %498 = vmatprep.mubr.f32.mxu0 0.0
        %499 = vmatmul.mubr.f32.gmra.mrb[0].mxu0 %v342
        %v500 = vpop.f32.mrb[0].mxu0
        %v501 = vadd.f32 %v278, %v500
        %v502 = vpop.f32.mrb[0].mxu0
        %v503 = vadd.f32 %v282, %v502
        %504 = vdwg.mxu0
        %505 = vmatprep.subr.mxu0 %v260
        %506 = vmatpush1.msra.mxu0 %v259
        %507 = vmatprep.subr.mxu0 %v264
        %508 = vmatpush1.msra.mxu0 %v263
        %509 = vmatprep.subr.mxu0 %v268
        %510 = vmatpush1.msra.mxu0 %v267
        %511 = vmatprep.subr.mxu0 %v272
        %512 = vmatpush1.msra.mxu0 %v271
        %513 = vmatprep.subr.mxu0 0.0
        %514 = vmatpush1.msra.mxu0 0.0
        %515 = vmatprep.subr.mxu0 0.0
        %516 = vmatpush1.msra.mxu0 0.0
        %517 = vmatprep.subr.mxu0 0.0
        %518 = vmatpush1.msra.mxu0 0.0
        %519 = vmatprep.subr.mxu0 0.0
        %520 = vmatpush1.msra.mxu0 0.0
        %521 = vmatprep.subr.mxu0 0.0
        %522 = vmatpush1.msra.mxu0 0.0
        %523 = vmatprep.subr.mxu0 0.0
        %524 = vmatpush1.msra.mxu0 0.0
        %525 = vmatprep.subr.mxu0 0.0
        %526 = vmatpush1.msra.mxu0 0.0
        %527 = vmatprep.subr.mxu0 0.0
        %528 = vmatpush1.msra.mxu0 0.0
        %529 = vmatprep.subr.mxu0 0.0
        %530 = vmatpush1.msra.mxu0 0.0
        %531 = vmatprep.subr.mxu0 0.0
        %532 = vmatpush1.msra.mxu0 0.0
        %533 = vmatprep.subr.mxu0 0.0
        %534 = vmatpush1.msra.mxu0 0.0
        %535 = vmatprep.subr.mxu0 0.0
        %536 = vmatpush1.msra.mxu0 0.0
        %537 = vmatprep.subr.mxu0 0.0
        %538 = vmatpush1.msra.mxu0 0.0
        %539 = vmatprep.subr.mxu0 0.0
        %540 = vmatpush1.msra.mxu0 0.0
        %541 = vmatprep.subr.mxu0 0.0
        %542 = vmatpush1.msra.mxu0 0.0
        %543 = vmatprep.subr.mxu0 0.0
        %544 = vmatpush1.msra.mxu0 0.0
        %545 = vmatprep.subr.mxu0 0.0
        %546 = vmatpush1.msra.mxu0 0.0
        %547 = vmatprep.subr.mxu0 0.0
        %548 = vmatpush1.msra.mxu0 0.0
        %549 = vmatprep.subr.mxu0 0.0
        %550 = vmatpush1.msra.mxu0 0.0
        %551 = vmatprep.subr.mxu0 0.0
        %552 = vmatpush1.msra.mxu0 0.0
        %553 = vmatprep.subr.mxu0 0.0
        %554 = vmatpush1.msra.mxu0 0.0
        %555 = vmatprep.subr.mxu0 0.0
        %556 = vmatpush1.msra.mxu0 0.0
        %557 = vmatprep.subr.mxu0 0.0
        %558 = vmatpush1.msra.mxu0 0.0
        %559 = vmatprep.subr.mxu0 0.0
        %560 = vmatpush1.msra.mxu0 0.0
        %561 = vmatprep.subr.mxu0 0.0
        %562 = vmatpush1.msra.mxu0 0.0
        %563 = vmatprep.subr.mxu0 0.0
        %564 = vmatpush1.msra.mxu0 0.0
        %565 = vmatprep.subr.mxu0 0.0
        %566 = vmatpush1.msra.mxu0 0.0
        %567 = vmatprep.subr.mxu0 0.0
        %568 = vmatpush1.msra.mxu0 0.0
        %569 = vmatprep.mubr.f32.mxu0 0.0
        %570 = vmatmul.mubr.f32.gmra.mrb[0].mxu0 %v297
        %v571 = vpop.f32.mrb[0].mxu0
        %v572 = vadd.f32 %v286, %v571
        %v573 = vpop.f32.mrb[0].mxu0
        %v574 = vadd.f32 %v290, %v573
        %575 = vmatprep.mubr.f32.mxu0 0.0
        %576 = vmatmul.mubr.f32.gmra.mrb[0].mxu0 %v300
        %v577 = vpop.f32.mrb[0].mxu0
        %v578 = vadd.f32 %v286, %v577
        %v579 = vpop.f32.mrb[0].mxu0
        %v580 = vadd.f32 %v290, %v579
        %581 = vmatprep.mubr.f32.mxu0 0.0
        %582 = vmatmul.mubr.f32.gmra.mrb[0].mxu0 %v303
        %v583 = vpop.f32.mrb[0].mxu0
        %v584 = vadd.f32 %v286, %v583
        %v585 = vpop.f32.mrb[0].mxu0
        %v586 = vadd.f32 %v290, %v585
        %587 = vmatprep.mubr.f32.mxu0 0.0
        %588 = vmatmul.mubr.f32.gmra.mrb[0].mxu0 %v306
        %v589 = vpop.f32.mrb[0].mxu0
        %v590 = vadd.f32 %v286, %v589
        %v591 = vpop.f32.mrb[0].mxu0
        %v592 = vadd.f32 %v290, %v591
        %593 = vmatprep.mubr.f32.mxu0 0.0
        %594 = vmatmul.mubr.f32.gmra.mrb[0].mxu0 %v309
        %v595 = vpop.f32.mrb[0].mxu0
        %v596 = vadd.f32 %v286, %v595
        %v597 = vpop.f32.mrb[0].mxu0
        %v598 = vadd.f32 %v290, %v597
        %599 = vmatprep.mubr.f32.mxu0 0.0
        %600 = vmatmul.mubr.f32.gmra.mrb[0].mxu0 %v312
        %v601 = vpop.f32.mrb[0].mxu0
        %v602 = vadd.f32 %v286, %v601
        %v603 = vpop.f32.mrb[0].mxu0
        %v604 = vadd.f32 %v290, %v603
        %605 = vmatprep.mubr.f32.mxu0 0.0
        %606 = vmatmul.mubr.f32.gmra.mrb[0].mxu0 %v315
        %v607 = vpop.f32.mrb[0].mxu0
        %v608 = vadd.f32 %v286, %v607
        %v609 = vpop.f32.mrb[0].mxu0
        %v610 = vadd.f32 %v290, %v609
        %611 = vmatprep.mubr.f32.mxu0 0.0
        %612 = vmatmul.mubr.f32.gmra.mrb[0].mxu0 %v318
        %v613 = vpop.f32.mrb[0].mxu0
        %v614 = vadd.f32 %v286, %v613
        %v615 = vpop.f32.mrb[0].mxu0
        %v616 = vadd.f32 %v290, %v615
        %617 = vmatprep.mubr.f32.mxu0 0.0
        %618 = vmatmul.mubr.f32.gmra.mrb[0].mxu0 %v321
        %v619 = vpop.f32.mrb[0].mxu0
        %v620 = vadd.f32 %v286, %v619
        %v621 = vpop.f32.mrb[0].mxu0
        %v622 = vadd.f32 %v290, %v621
        %623 = vmatprep.mubr.f32.mxu0 0.0
        %624 = vmatmul.mubr.f32.gmra.mrb[0].mxu0 %v324
        %v625 = vpop.f32.mrb[0].mxu0
        %v626 = vadd.f32 %v286, %v625
        %v627 = vpop.f32.mrb[0].mxu0
        %v628 = vadd.f32 %v290, %v627
        %629 = vmatprep.mubr.f32.mxu0 0.0
        %630 = vmatmul.mubr.f32.gmra.mrb[0].mxu0 %v327
        %v631 = vpop.f32.mrb[0].mxu0
        %v632 = vadd.f32 %v286, %v631
        %v633 = vpop.f32.mrb[0].mxu0
        %v634 = vadd.f32 %v290, %v633
        %635 = vmatprep.mubr.f32.mxu0 0.0
        %636 = vmatmul.mubr.f32.gmra.mrb[0].mxu0 %v330
        %v637 = vpop.f32.mrb[0].mxu0
        %v638 = vadd.f32 %v286, %v637
        %v639 = vpop.f32.mrb[0].mxu0
        %v640 = vadd.f32 %v290, %v639
        %641 = vmatprep.mubr.f32.mxu0 0.0
        %642 = vmatmul.mubr.f32.gmra.mrb[0].mxu0 %v333
        %v643 = vpop.f32.mrb[0].mxu0
        %v644 = vadd.f32 %v286, %v643
        %v645 = vpop.f32.mrb[0].mxu0
        %v646 = vadd.f32 %v290, %v645
        %647 = vmatprep.mubr.f32.mxu0 0.0
        %648 = vmatmul.mubr.f32.gmra.mrb[0].mxu0 %v336
        %v649 = vpop.f32.mrb[0].mxu0
        %v650 = vadd.f32 %v286, %v649
        %v651 = vpop.f32.mrb[0].mxu0
        %v652 = vadd.f32 %v290, %v651
        %653 = vmatprep.mubr.f32.mxu0 0.0
        %654 = vmatmul.mubr.f32.gmra.mrb[0].mxu0 %v339
        %v655 = vpop.f32.mrb[0].mxu0
        %v656 = vadd.f32 %v286, %v655
        %v657 = vpop.f32.mrb[0].mxu0
        %v658 = vadd.f32 %v290, %v657
        %659 = vmatprep.mubr.f32.mxu0 0.0
        %660 = vmatmul.mubr.f32.gmra.mrb[0].mxu0 %v342
        %v661 = vpop.f32.mrb[0].mxu0
        %v662 = vadd.f32 %v286, %v661
        %v663 = vpop.f32.mrb[0].mxu0
        %v664 = vadd.f32 %v290, %v663
        %665 = vdwg.mxu0
        %v666 = vmax.f32 %v411, 0.0
        %v667 = vmax.f32 %v413, 0.0
        %v668 = vmax.f32 %v572, 0.0
        %v669 = vmax.f32 %v574, 0.0
        %v670 = vmax.f32 %v417, 0.0
        %v671 = vmax.f32 %v419, 0.0
        %v672 = vmax.f32 %v578, 0.0
        %v673 = vmax.f32 %v580, 0.0
        %v674 = vmax.f32 %v423, 0.0
        %v675 = vmax.f32 %v425, 0.0
        %v676 = vmax.f32 %v584, 0.0
        %v677 = vmax.f32 %v586, 0.0
        %v678 = vmax.f32 %v429, 0.0
        %v679 = vmax.f32 %v431, 0.0
        %v680 = vmax.f32 %v590, 0.0
        %v681 = vmax.f32 %v592, 0.0
        %v682 = vmax.f32 %v435, 0.0
        %v683 = vmax.f32 %v437, 0.0
        %v684 = vmax.f32 %v596, 0.0
        %v685 = vmax.f32 %v598, 0.0
        %v686 = vmax.f32 %v441, 0.0
        %v687 = vmax.f32 %v443, 0.0
        %v688 = vmax.f32 %v602, 0.0
        %v689 = vmax.f32 %v604, 0.0
        %v690 = vmax.f32 %v447, 0.0
        %v691 = vmax.f32 %v449, 0.0
        %v692 = vmax.f32 %v608, 0.0
        %v693 = vmax.f32 %v610, 0.0
        %v694 = vmax.f32 %v453, 0.0
        %v695 = vmax.f32 %v455, 0.0
        %v696 = vmax.f32 %v614, 0.0
        %v697 = vmax.f32 %v616, 0.0
        %v698 = vmax.f32 %v459, 0.0
        %v699 = vmax.f32 %v461, 0.0
        %v700 = vmax.f32 %v620, 0.0
        %v701 = vmax.f32 %v622, 0.0
        %v702 = vmax.f32 %v465, 0.0
        %v703 = vmax.f32 %v467, 0.0
        %v704 = vmax.f32 %v626, 0.0
        %v705 = vmax.f32 %v628, 0.0
        %v706 = vmax.f32 %v471, 0.0
        %v707 = vmax.f32 %v473, 0.0
        %v708 = vmax.f32 %v632, 0.0
        %v709 = vmax.f32 %v634, 0.0
        %v710 = vmax.f32 %v477, 0.0
        %v711 = vmax.f32 %v479, 0.0
        %v712 = vmax.f32 %v638, 0.0
        %v713 = vmax.f32 %v640, 0.0
        %v714 = vmax.f32 %v483, 0.0
        %v715 = vmax.f32 %v485, 0.0
        %v716 = vmax.f32 %v644, 0.0
        %v717 = vmax.f32 %v646, 0.0
        %v718 = vmax.f32 %v489, 0.0
        %v719 = vmax.f32 %v491, 0.0
        %v720 = vmax.f32 %v650, 0.0
        %v721 = vmax.f32 %v652, 0.0
        %v722 = vmax.f32 %v495, 0.0
        %v723 = vmax.f32 %v497, 0.0
        %v724 = vmax.f32 %v656, 0.0
        %v725 = vmax.f32 %v658, 0.0
        %v726 = vmax.f32 %v501, 0.0
        %v727 = vmax.f32 %v503, 0.0
        %v728 = vmax.f32 %v662, 0.0
        %v729 = vmax.f32 %v664, 0.0
        %v730 = vld [vmem:[#allocation2] sm:$0xff]
        %v731 = vld [vmem:[#allocation2 + $0x8] sm:$0xff]
        %v732 = vld [vmem:[#allocation2 + $0x10] sm:$0xff]
        %v733 = vld [vmem:[#allocation2 + $0x18] sm:$0xff]
        %v734 = vld [vmem:[#allocation2 + $0x20] sm:$0xff]
        %v735 = vld [vmem:[#allocation2 + $0x28] sm:$0xff]
        %v736 = vld [vmem:[#allocation2 + $0x30] sm:$0xff]
        %v737 = vld [vmem:[#allocation2 + $0x38] sm:$0xff]
        %v738 = vld [vmem:[#allocation2 + $0x40] sm:$0xff]
        %v739 = vld [vmem:[#allocation2 + $0x48] sm:$0xff]
        %v740 = vld [vmem:[#allocation2 + $0x50] sm:$0xff]
        %v741 = vld [vmem:[#allocation2 + $0x58] sm:$0xff]
        %v742 = vld [vmem:[#allocation2 + $0x60] sm:$0xff]
        %v743 = vld [vmem:[#allocation2 + $0x68] sm:$0xff]
        %v744 = vld [vmem:[#allocation2 + $0x70] sm:$0xff]
        %v745 = vld [vmem:[#allocation2 + $0x78] sm:$0xff]
        %v746 = vld [vmem:[#allocation2 + $0x80] sm:$0xff]
        %v747 = vld [vmem:[#allocation2 + $0x88] sm:$0xff]
        %v748 = vld [vmem:[#allocation2 + $0x90] sm:$0xff]
        %v749 = vld [vmem:[#allocation2 + $0x98] sm:$0xff]
        %v750 = vld [vmem:[#allocation2 + $0xa0] sm:$0xff]
        %v751 = vld [vmem:[#allocation2 + $0xa8] sm:$0xff]
        %v752 = vld [vmem:[#allocation2 + $0xb0] sm:$0xff]
        %v753 = vld [vmem:[#allocation2 + $0xb8] sm:$0xff]
        %v754 = vld [vmem:[#allocation2 + $0xc0] sm:$0xff]
        %v755 = vld [vmem:[#allocation2 + $0xc8] sm:$0xff]
        %v756 = vld [vmem:[#allocation2 + $0xd0] sm:$0xff]
        %v757 = vld [vmem:[#allocation2 + $0xd8] sm:$0xff]
        %v758 = vld [vmem:[#allocation2 + $0xe0] sm:$0xff]
        %v759 = vld [vmem:[#allocation2 + $0xe8] sm:$0xff]
        %v760 = vld [vmem:[#allocation2 + $0xf0] sm:$0xff]
        %v761 = vld [vmem:[#allocation2 + $0xf8] sm:$0xff]
        %v762 = vld [vmem:[#allocation2 + $0x100] sm:$0xff]
        %v763 = vld [vmem:[#allocation2 + $0x108] sm:$0xff]
        %v764 = vld [vmem:[#allocation2 + $0x110] sm:$0xff]
        %v765 = vld [vmem:[#allocation2 + $0x118] sm:$0xff]
        %v766 = vld [vmem:[#allocation2 + $0x120] sm:$0xff]
        %v767 = vld [vmem:[#allocation2 + $0x128] sm:$0xff]
        %v768 = vld [vmem:[#allocation2 + $0x130] sm:$0xff]
        %v769 = vld [vmem:[#allocation2 + $0x138] sm:$0xff]
        %v770 = vld [vmem:[#allocation2 + $0x140] sm:$0xff]
        %v771 = vld [vmem:[#allocation2 + $0x148] sm:$0xff]
        %v772 = vld [vmem:[#allocation2 + $0x150] sm:$0xff]
        %v773 = vld [vmem:[#allocation2 + $0x158] sm:$0xff]
        %v774 = vld [vmem:[#allocation2 + $0x160] sm:$0xff]
        %v775 = vld [vmem:[#allocation2 + $0x168] sm:$0xff]
        %v776 = vld [vmem:[#allocation2 + $0x170] sm:$0xff]
        %v777 = vld [vmem:[#allocation2 + $0x178] sm:$0xff]
        %v778 = vld [vmem:[#allocation2 + $0x180] sm:$0xff]
        %v779 = vld [vmem:[#allocation2 + $0x188] sm:$0xff]
        %v780 = vld [vmem:[#allocation2 + $0x190] sm:$0xff]
        %v781 = vld [vmem:[#allocation2 + $0x198] sm:$0xff]
        %v782 = vld [vmem:[#allocation2 + $0x1a0] sm:$0xff]
        %v783 = vld [vmem:[#allocation2 + $0x1a8] sm:$0xff]
        %v784 = vld [vmem:[#allocation2 + $0x1b0] sm:$0xff]
        %v785 = vld [vmem:[#allocation2 + $0x1b8] sm:$0xff]
        %v786 = vld [vmem:[#allocation2 + $0x1c0] sm:$0xff]
        %v787 = vld [vmem:[#allocation2 + $0x1c8] sm:$0xff]
        %v788 = vld [vmem:[#allocation2 + $0x1d0] sm:$0xff]
        %v789 = vld [vmem:[#allocation2 + $0x1d8] sm:$0xff]
        %v790 = vld [vmem:[#allocation2 + $0x1e0] sm:$0xff]
        %v791 = vld [vmem:[#allocation2 + $0x1e8] sm:$0xff]
        %v792 = vld [vmem:[#allocation2 + $0x1f0] sm:$0xff]
        %v793 = vld [vmem:[#allocation2 + $0x1f8] sm:$0xff]
        %v794 = vld [vmem:[%s4] sm:$0x1]
        %v796 = vlaneseq
        %v797 = vshrl.u32 %v796, 7
        %v798 = vsub.s32 0, %v797
        %v799 = vrot.slane %v794, %v798
        %801 = vmatprep.subr.mxu0 0.0
        %802 = vmatpush1.msra.mxu0 %v730
        %803 = vmatprep.subr.mxu0 0.0
        %804 = vmatpush1.msra.mxu0 %v731
        %805 = vmatprep.subr.mxu0 0.0
        %806 = vmatpush1.msra.mxu0 %v732
        %807 = vmatprep.subr.mxu0 0.0
        %808 = vmatpush1.msra.mxu0 %v733
        %809 = vmatprep.subr.mxu0 0.0
        %810 = vmatpush1.msra.mxu0 %v734
        %811 = vmatprep.subr.mxu0 0.0
        %812 = vmatpush1.msra.mxu0 %v735
        %813 = vmatprep.subr.mxu0 0.0
        %814 = vmatpush1.msra.mxu0 %v736
        %815 = vmatprep.subr.mxu0 0.0
        %816 = vmatpush1.msra.mxu0 %v737
        %817 = vmatprep.subr.mxu0 0.0
        %818 = vmatpush1.msra.mxu0 %v738
        %819 = vmatprep.subr.mxu0 0.0
        %820 = vmatpush1.msra.mxu0 %v739
        %821 = vmatprep.subr.mxu0 0.0
        %822 = vmatpush1.msra.mxu0 %v740
        %823 = vmatprep.subr.mxu0 0.0
        %824 = vmatpush1.msra.mxu0 %v741
        %825 = vmatprep.subr.mxu0 0.0
        %826 = vmatpush1.msra.mxu0 %v742
        %827 = vmatprep.subr.mxu0 0.0
        %828 = vmatpush1.msra.mxu0 %v743
        %829 = vmatprep.subr.mxu0 0.0
        %830 = vmatpush1.msra.mxu0 %v744
        %831 = vmatprep.subr.mxu0 0.0
        %832 = vmatpush1.msra.mxu0 %v745
        %833 = vmatprep.subr.mxu0 0.0
        %834 = vmatpush1.msra.mxu0 %v746
        %835 = vmatprep.subr.mxu0 0.0
        %836 = vmatpush1.msra.mxu0 %v747
        %837 = vmatprep.subr.mxu0 0.0
        %838 = vmatpush1.msra.mxu0 %v748
        %839 = vmatprep.subr.mxu0 0.0
        %840 = vmatpush1.msra.mxu0 %v749
        %841 = vmatprep.subr.mxu0 0.0
        %842 = vmatpush1.msra.mxu0 %v750
        %843 = vmatprep.subr.mxu0 0.0
        %844 = vmatpush1.msra.mxu0 %v751
        %845 = vmatprep.subr.mxu0 0.0
        %846 = vmatpush1.msra.mxu0 %v752
        %847 = vmatprep.subr.mxu0 0.0
        %848 = vmatpush1.msra.mxu0 %v753
        %849 = vmatprep.subr.mxu0 0.0
        %850 = vmatpush1.msra.mxu0 %v754
        %851 = vmatprep.subr.mxu0 0.0
        %852 = vmatpush1.msra.mxu0 %v755
        %853 = vmatprep.subr.mxu0 0.0
        %854 = vmatpush1.msra.mxu0 %v756
        %855 = vmatprep.subr.mxu0 0.0
        %856 = vmatpush1.msra.mxu0 %v757
        %857 = vmatprep.subr.mxu0 0.0
        %858 = vmatpush1.msra.mxu0 %v758
        %859 = vmatprep.subr.mxu0 0.0
        %860 = vmatpush1.msra.mxu0 %v759
        %861 = vmatprep.subr.mxu0 0.0
        %862 = vmatpush1.msra.mxu0 %v760
        %863 = vmatprep.subr.mxu0 0.0
        %864 = vmatpush1.msra.mxu0 %v761
        %865 = vmatprep.mubr.f32.mxu0 %v667
        %866 = vmatmul.mubr.f32.gmra.mrb[0].mxu0 %v666
        %v867 = vpop.f32.mrb[0].mxu0
        %v868 = vadd.f32 %v799, %v867
        %v869 = vpop.f32.mrb[0].mxu0
        %870 = vmatprep.mubr.f32.mxu0 %v671
        %871 = vmatmul.mubr.f32.gmra.mrb[0].mxu0 %v670
        %v872 = vpop.f32.mrb[0].mxu0
        %v873 = vadd.f32 %v799, %v872
        %v874 = vpop.f32.mrb[0].mxu0
        %875 = vmatprep.mubr.f32.mxu0 %v675
        %876 = vmatmul.mubr.f32.gmra.mrb[0].mxu0 %v674
        %v877 = vpop.f32.mrb[0].mxu0
        %v878 = vadd.f32 %v799, %v877
        %v879 = vpop.f32.mrb[0].mxu0
        %880 = vmatprep.mubr.f32.mxu0 %v679
        %881 = vmatmul.mubr.f32.gmra.mrb[0].mxu0 %v678
        %v882 = vpop.f32.mrb[0].mxu0
        %v883 = vadd.f32 %v799, %v882
        %v884 = vpop.f32.mrb[0].mxu0
        %885 = vmatprep.mubr.f32.mxu0 %v683
        %886 = vmatmul.mubr.f32.gmra.mrb[0].mxu0 %v682
        %v887 = vpop.f32.mrb[0].mxu0
        %v888 = vadd.f32 %v799, %v887
        %v889 = vpop.f32.mrb[0].mxu0
        %890 = vmatprep.mubr.f32.mxu0 %v687
        %891 = vmatmul.mubr.f32.gmra.mrb[0].mxu0 %v686
        %v892 = vpop.f32.mrb[0].mxu0
        %v893 = vadd.f32 %v799, %v892
        %v894 = vpop.f32.mrb[0].mxu0
        %895 = vmatprep.mubr.f32.mxu0 %v691
        %896 = vmatmul.mubr.f32.gmra.mrb[0].mxu0 %v690
        %v897 = vpop.f32.mrb[0].mxu0
        %v898 = vadd.f32 %v799, %v897
        %v899 = vpop.f32.mrb[0].mxu0
        %900 = vmatprep.mubr.f32.mxu0 %v695
        %901 = vmatmul.mubr.f32.gmra.mrb[0].mxu0 %v694
        %v902 = vpop.f32.mrb[0].mxu0
        %v903 = vadd.f32 %v799, %v902
        %v904 = vpop.f32.mrb[0].mxu0
        %905 = vmatprep.mubr.f32.mxu0 %v699
        %906 = vmatmul.mubr.f32.gmra.mrb[0].mxu0 %v698
        %v907 = vpop.f32.mrb[0].mxu0
        %v908 = vadd.f32 %v799, %v907
        %v909 = vpop.f32.mrb[0].mxu0
        %910 = vmatprep.mubr.f32.mxu0 %v703
        %911 = vmatmul.mubr.f32.gmra.mrb[0].mxu0 %v702
        %v912 = vpop.f32.mrb[0].mxu0
        %v913 = vadd.f32 %v799, %v912
        %v914 = vpop.f32.mrb[0].mxu0
        %915 = vmatprep.mubr.f32.mxu0 %v707
        %916 = vmatmul.mubr.f32.gmra.mrb[0].mxu0 %v706
        %v917 = vpop.f32.mrb[0].mxu0
        %v918 = vadd.f32 %v799, %v917
        %v919 = vpop.f32.mrb[0].mxu0
        %920 = vmatprep.mubr.f32.mxu0 %v711
        %921 = vmatmul.mubr.f32.gmra.mrb[0].mxu0 %v710
        %v922 = vpop.f32.mrb[0].mxu0
        %v923 = vadd.f32 %v799, %v922
        %v924 = vpop.f32.mrb[0].mxu0
        %925 = vmatprep.mubr.f32.mxu0 %v715
        %926 = vmatmul.mubr.f32.gmra.mrb[0].mxu0 %v714
        %v927 = vpop.f32.mrb[0].mxu0
        %v928 = vadd.f32 %v799, %v927
        %v929 = vpop.f32.mrb[0].mxu0
        %930 = vmatprep.mubr.f32.mxu0 %v719
        %931 = vmatmul.mubr.f32.gmra.mrb[0].mxu0 %v718
        %v932 = vpop.f32.mrb[0].mxu0
        %v933 = vadd.f32 %v799, %v932
        %v934 = vpop.f32.mrb[0].mxu0
        %935 = vmatprep.mubr.f32.mxu0 %v723
        %936 = vmatmul.mubr.f32.gmra.mrb[0].mxu0 %v722
        %v937 = vpop.f32.mrb[0].mxu0
        %v938 = vadd.f32 %v799, %v937
        %v939 = vpop.f32.mrb[0].mxu0
        %940 = vmatprep.mubr.f32.mxu0 %v727
        %941 = vmatmul.mubr.f32.gmra.mrb[0].mxu0 %v726
        %v942 = vpop.f32.mrb[0].mxu0
        %v943 = vadd.f32 %v799, %v942
        %v944 = vpop.f32.mrb[0].mxu0
        %945 = vdwg.mxu0
        %946 = vmatprep.subr.mxu0 0.0
        %947 = vmatpush1.msra.mxu0 %v762
        %948 = vmatprep.subr.mxu0 0.0
        %949 = vmatpush1.msra.mxu0 %v763
        %950 = vmatprep.subr.mxu0 0.0
        %951 = vmatpush1.msra.mxu0 %v764
        %952 = vmatprep.subr.mxu0 0.0
        %953 = vmatpush1.msra.mxu0 %v765
        %954 = vmatprep.subr.mxu0 0.0
        %955 = vmatpush1.msra.mxu0 %v766
        %956 = vmatprep.subr.mxu0 0.0
        %957 = vmatpush1.msra.mxu0 %v767
        %958 = vmatprep.subr.mxu0 0.0
        %959 = vmatpush1.msra.mxu0 %v768
        %960 = vmatprep.subr.mxu0 0.0
        %961 = vmatpush1.msra.mxu0 %v769
        %962 = vmatprep.subr.mxu0 0.0
        %963 = vmatpush1.msra.mxu0 %v770
        %964 = vmatprep.subr.mxu0 0.0
        %965 = vmatpush1.msra.mxu0 %v771
        %966 = vmatprep.subr.mxu0 0.0
        %967 = vmatpush1.msra.mxu0 %v772
        %968 = vmatprep.subr.mxu0 0.0
        %969 = vmatpush1.msra.mxu0 %v773
        %970 = vmatprep.subr.mxu0 0.0
        %971 = vmatpush1.msra.mxu0 %v774
        %972 = vmatprep.subr.mxu0 0.0
        %973 = vmatpush1.msra.mxu0 %v775
        %974 = vmatprep.subr.mxu0 0.0
        %975 = vmatpush1.msra.mxu0 %v776
        %976 = vmatprep.subr.mxu0 0.0
        %977 = vmatpush1.msra.mxu0 %v777
        %978 = vmatprep.subr.mxu0 0.0
        %979 = vmatpush1.msra.mxu0 %v778
        %980 = vmatprep.subr.mxu0 0.0
        %981 = vmatpush1.msra.mxu0 %v779
        %982 = vmatprep.subr.mxu0 0.0
        %983 = vmatpush1.msra.mxu0 %v780
        %984 = vmatprep.subr.mxu0 0.0
        %985 = vmatpush1.msra.mxu0 %v781
        %986 = vmatprep.subr.mxu0 0.0
        %987 = vmatpush1.msra.mxu0 %v782
        %988 = vmatprep.subr.mxu0 0.0
        %989 = vmatpush1.msra.mxu0 %v783
        %990 = vmatprep.subr.mxu0 0.0
        %991 = vmatpush1.msra.mxu0 %v784
        %992 = vmatprep.subr.mxu0 0.0
        %993 = vmatpush1.msra.mxu0 %v785
        %994 = vmatprep.subr.mxu0 0.0
        %995 = vmatpush1.msra.mxu0 %v786
        %996 = vmatprep.subr.mxu0 0.0
        %997 = vmatpush1.msra.mxu0 %v787
        %998 = vmatprep.subr.mxu0 0.0
        %999 = vmatpush1.msra.mxu0 %v788
        %1000 = vmatprep.subr.mxu0 0.0
        %1001 = vmatpush1.msra.mxu0 %v789
        %1002 = vmatprep.subr.mxu0 0.0
        %1003 = vmatpush1.msra.mxu0 %v790
        %1004 = vmatprep.subr.mxu0 0.0
        %1005 = vmatpush1.msra.mxu0 %v791
        %1006 = vmatprep.subr.mxu0 0.0
        %1007 = vmatpush1.msra.mxu0 %v792
        %1008 = vmatprep.subr.mxu0 0.0
        %1009 = vmatpush1.msra.mxu0 %v793
        %1010 = vmatprep.mubr.f32.mxu0 %v669
        %1011 = vmatmul.mubr.f32.gmra.mrb[0].mxu0 %v668
        %v1012 = vpop.f32.mrb[0].mxu0
        %v1013 = vadd.f32 %v868, %v1012
        %v1014 = vpop.f32.mrb[0].mxu0
        %1015 = vmatprep.mubr.f32.mxu0 %v673
        %1016 = vmatmul.mubr.f32.gmra.mrb[0].mxu0 %v672
        %v1017 = vpop.f32.mrb[0].mxu0
        %v1018 = vadd.f32 %v873, %v1017
        %v1019 = vpop.f32.mrb[0].mxu0
        %1020 = vmatprep.mubr.f32.mxu0 %v677
        %1021 = vmatmul.mubr.f32.gmra.mrb[0].mxu0 %v676
        %v1022 = vpop.f32.mrb[0].mxu0
        %v1023 = vadd.f32 %v878, %v1022
        %v1024 = vpop.f32.mrb[0].mxu0
        %1025 = vmatprep.mubr.f32.mxu0 %v681
        %1026 = vmatmul.mubr.f32.gmra.mrb[0].mxu0 %v680
        %v1027 = vpop.f32.mrb[0].mxu0
        %v1028 = vadd.f32 %v883, %v1027
        %v1029 = vpop.f32.mrb[0].mxu0
        %1030 = vmatprep.mubr.f32.mxu0 %v685
        %1031 = vmatmul.mubr.f32.gmra.mrb[0].mxu0 %v684
        %v1032 = vpop.f32.mrb[0].mxu0
        %v1033 = vadd.f32 %v888, %v1032
        %v1034 = vpop.f32.mrb[0].mxu0
        %1035 = vmatprep.mubr.f32.mxu0 %v689
        %1036 = vmatmul.mubr.f32.gmra.mrb[0].mxu0 %v688
        %v1037 = vpop.f32.mrb[0].mxu0
        %v1038 = vadd.f32 %v893, %v1037
        %v1039 = vpop.f32.mrb[0].mxu0
        %1040 = vmatprep.mubr.f32.mxu0 %v693
        %1041 = vmatmul.mubr.f32.gmra.mrb[0].mxu0 %v692
        %v1042 = vpop.f32.mrb[0].mxu0
        %v1043 = vadd.f32 %v898, %v1042
        %v1044 = vpop.f32.mrb[0].mxu0
        %1045 = vmatprep.mubr.f32.mxu0 %v697
        %1046 = vmatmul.mubr.f32.gmra.mrb[0].mxu0 %v696
        %v1047 = vpop.f32.mrb[0].mxu0
        %v1048 = vadd.f32 %v903, %v1047
        %v1049 = vpop.f32.mrb[0].mxu0
        %1050 = vmatprep.mubr.f32.mxu0 %v701
        %1051 = vmatmul.mubr.f32.gmra.mrb[0].mxu0 %v700
        %v1052 = vpop.f32.mrb[0].mxu0
        %v1053 = vadd.f32 %v908, %v1052
        %v1054 = vpop.f32.mrb[0].mxu0
        %1055 = vmatprep.mubr.f32.mxu0 %v705
        %1056 = vmatmul.mubr.f32.gmra.mrb[0].mxu0 %v704
        %v1057 = vpop.f32.mrb[0].mxu0
        %v1058 = vadd.f32 %v913, %v1057
        %v1059 = vpop.f32.mrb[0].mxu0
        %1060 = vmatprep.mubr.f32.mxu0 %v709
        %1061 = vmatmul.mubr.f32.gmra.mrb[0].mxu0 %v708
        %v1062 = vpop.f32.mrb[0].mxu0
        %v1063 = vadd.f32 %v918, %v1062
        %v1064 = vpop.f32.mrb[0].mxu0
        %1065 = vmatprep.mubr.f32.mxu0 %v713
        %1066 = vmatmul.mubr.f32.gmra.mrb[0].mxu0 %v712
        %v1067 = vpop.f32.mrb[0].mxu0
        %v1068 = vadd.f32 %v923, %v1067
        %v1069 = vpop.f32.mrb[0].mxu0
        %1070 = vmatprep.mubr.f32.mxu0 %v717
        %1071 = vmatmul.mubr.f32.gmra.mrb[0].mxu0 %v716
        %v1072 = vpop.f32.mrb[0].mxu0
        %v1073 = vadd.f32 %v928, %v1072
        %v1074 = vpop.f32.mrb[0].mxu0
        %1075 = vmatprep.mubr.f32.mxu0 %v721
        %1076 = vmatmul.mubr.f32.gmra.mrb[0].mxu0 %v720
        %v1077 = vpop.f32.mrb[0].mxu0
        %v1078 = vadd.f32 %v933, %v1077
        %v1079 = vpop.f32.mrb[0].mxu0
        %1080 = vmatprep.mubr.f32.mxu0 %v725
        %1081 = vmatmul.mubr.f32.gmra.mrb[0].mxu0 %v724
        %v1082 = vpop.f32.mrb[0].mxu0
        %v1083 = vadd.f32 %v938, %v1082
        %v1084 = vpop.f32.mrb[0].mxu0
        %1085 = vmatprep.mubr.f32.mxu0 %v729
        %1086 = vmatmul.mubr.f32.gmra.mrb[0].mxu0 %v728
        %v1087 = vpop.f32.mrb[0].mxu0
        %v1088 = vadd.f32 %v943, %v1087
        %v1089 = vpop.f32.mrb[0].mxu0
        %1090 = vdwg.mxu0
        %1091 = vst [vmem:[%s233] sm:$0xff] %v1013
        %1092 = vst [vmem:[%s233 + $0x8] sm:$0xff] %v1018
        %1093 = vst [vmem:[%s233 + $0x10] sm:$0xff] %v1023
        %1094 = vst [vmem:[%s233 + $0x18] sm:$0xff] %v1028
        %1095 = vst [vmem:[%s233 + $0x20] sm:$0xff] %v1033
        %1096 = vst [vmem:[%s233 + $0x28] sm:$0xff] %v1038
        %1097 = vst [vmem:[%s233 + $0x30] sm:$0xff] %v1043
        %1098 = vst [vmem:[%s233 + $0x38] sm:$0xff] %v1048
        %1099 = vst [vmem:[%s233 + $0x40] sm:$0xff] %v1053
        %1100 = vst [vmem:[%s233 + $0x48] sm:$0xff] %v1058
        %1101 = vst [vmem:[%s233 + $0x50] sm:$0xff] %v1063
        %1102 = vst [vmem:[%s233 + $0x58] sm:$0xff] %v1068
        %1103 = vst [vmem:[%s233 + $0x60] sm:$0xff] %v1073
        %1104 = vst [vmem:[%s233 + $0x68] sm:$0xff] %v1078
        %1105 = vst [vmem:[%s233 + $0x70] sm:$0xff] %v1083
        %1106 = vst [vmem:[%s233 + $0x78] sm:$0xff] %v1088
        %s1107 = sand.u32 %s138, 1
        %s1108 = scalar_lea.sflag [#allocation4], %s1107
        %s1109 = sand.u32 %s138, 1
        %s1110 = smul.addr %s1109, 128
        %s1111 = scalar_lea.vmem [#allocation5], %s1110
        // Predicated region
        $region45: #{tpu_custom_call.1} parent=39 // pred_check
          %p1112 = pneg %p148
        $region46: #{tpu_custom_call.1} parent=39 // pred_check_branch
          %1114 = sbr.rel (%p1112) target = $region48
        $region47: #{tpu_custom_call.1} parent=39 // pred_region
          %s1115 = smul.u32 16, %s20
          %s1117 = ssub.s32 2048, 2048
          %1118 = vsyncadd %s1108, %s1117
          %s1119 = smul.addr %s1115, 128
          %s1120 = scalar_lea.hbm %s5, %s1119
          %s1121 = sshll.u32 %s1111, 4
          %s1122 = int_to_ptr.vmem [resolvable:$true] %s1121
          %1127 = dma.vmem_to_hbm [thread:$0]  %s1122, 2048, %s1120, %s1108, 128, 128, 8
        $region48: #{tpu_custom_call.1} parent=39 // pred_fallthru
          _
      $region40: #{tpu_custom_call.1} parent=5 // pred_fallthru
        _
      %p1128 = scmp.le.s32.totalorder 2, %s15
      // Predicated region
      $region49: #{tpu_custom_call.1} parent=5 // pred_check
        %p1129 = pneg %p1128
      $region50: #{tpu_custom_call.1} parent=5 // pred_check_branch
        %1131 = sbr.rel (%p1129) target = $region52
      $region51: #{tpu_custom_call.1} parent=5 // pred_region
        %s1132 = ssub.s32 %s15, 2
        // Predicated region
        $region53: #{tpu_custom_call.1} parent=51 // pred_check
          %p1133 = pneg %p154
        $region54: #{tpu_custom_call.1} parent=51 // pred_check_branch
          %1135 = sbr.rel (%p1133) target = $region56
        $region55: #{tpu_custom_call.1} parent=51 // pred_region
          %s1136 = sand.u32 %s139, 1
          %s1137 = scalar_lea.sflag [#allocation4], %s1136
          %s1138 = sand.u32 %s139, 1
          %s1139 = smul.addr %s1138, 128
          %s1140 = scalar_lea.vmem [#allocation5], %s1139
          %1141 = dma.done %s1137, 2048
        $region56: #{tpu_custom_call.1} parent=51 // pred_fallthru
          _
      $region52: #{tpu_custom_call.1} parent=5 // pred_fallthru
        _
    $region6: #{tpu_custom_call.1} parent=1 // loop_footer
      %s19 = sadd.s32 1, %s15
    $region7: #{tpu_custom_call.1} parent=1 // loop_footer_branch
      %14 = sbr.rel target = $region3
    $region8: #{tpu_custom_call.1} parent=1 // loop_exit
      _
    %1142 = vsyncpa [#allocation3], 1
    %s1143 = scalar_lea.sflag [#allocation3], 1
    %1144 = vsyncpa %s1143, 1
    %1145 = vsyncpa [#allocation4], 1
    %s1146 = scalar_lea.sflag [#allocation4], 1
    %1147 = vsyncpa %s1146, 1

</llo_original>
